<compile_context>
chip_gen: v7x
topology: tpu7x:2x2x1
jax: 0.10.0
libtpu: 0.0.40
codegen_flags: <defaults>
</compile_context>

<pallas_src>
import functools

import jax
import jax.numpy as jnp
from jax.experimental import pallas as pl
from jax.experimental.pallas import tpu as pltpu


# ---------------------------------------------------------------------------
# Kernel
# ---------------------------------------------------------------------------
def mlp_kernel(x_ref, w1_ref, b1_ref, w2_ref, b2_ref, w3_ref, b3_ref, o_ref):
    # Layer 1: Linear(64 -> 1024) + ReLU.  In-kernel f32->bf16 cast of x (hidden
    # under the MXU), bf16 MXU matmul, f32 accumulate, bias+ReLU on f32.
    x_bf16 = x_ref[...].astype(jnp.bfloat16)
    h1 = jnp.dot(x_bf16, w1_ref[...], preferred_element_type=jnp.float32)
    h1 = jnp.maximum(h1 + b1_ref[...], 0.0)

    # Layer 2: Linear(1024 -> 128) + ReLU.  Activation downcast to bf16 only for
    # the MXU feed; elementwise stays f32.
    h2 = jnp.dot(h1.astype(jnp.bfloat16), w2_ref[...],
                 preferred_element_type=jnp.float32)
    h2 = jnp.maximum(h2 + b2_ref[...], 0.0)

    # Layer 3: Linear(128 -> 10), all f32 (tiny), direct 10-wide store.
    out = jnp.dot(h2, w3_ref[...], preferred_element_type=jnp.float32)
    o_ref[...] = (out + b3_ref[...]).astype(o_ref.dtype)


# ---------------------------------------------------------------------------
# Wrapper
# ---------------------------------------------------------------------------
def _round_up(n, m):
    return ((n + m - 1) // m) * m


@functools.partial(jax.jit, static_argnames=("tb",))
def mlp_forward(x, w1, b1, w2, b2, w3, b3, *, tb=1024):
    """x: [B, 64] float.  w1/w2 bf16 [in, out]; b1/b2 f32; w3/b3 f32.

    Returns [B, 10] float32.
    """
    B = x.shape[0]

    # Batch tile: big enough to amortize per-step overhead, but aim for >= 2
    # grid steps so v7x's second TensorCore gets work ("parallel" batch axis).
    tb_eff = min(tb, max(8, _round_up(pl.cdiv(B, 2), 8)))
    grid = (pl.cdiv(B, tb_eff),)   # ragged final block handled by Pallas masking

    # Weights/biases: same block every step -> DMA'd once, VMEM-resident.
    def resident(shape):
        return pl.BlockSpec(shape, lambda i: (0, 0))

    return pl.pallas_call(
        mlp_kernel,
        out_shape=jax.ShapeDtypeStruct((B, 10), jnp.float32),
        grid_spec=pltpu.PrefetchScalarGridSpec(
            num_scalar_prefetch=0,
            grid=grid,
            in_specs=[
                pl.BlockSpec((tb_eff, 64), lambda i: (i, 0)),   # x tile (f32)
                resident((64, 1024)),                           # w1 (bf16)
                resident((1, 1024)),                            # b1 (f32)
                resident((1024, 128)),                          # w2 (bf16)
                resident((1, 128)),                             # b2 (f32)
                resident((128, 10)),                            # w3 (f32)
                resident((1, 10)),                              # b3 (f32)
            ],
            out_specs=pl.BlockSpec((tb_eff, 10), lambda i: (i, 0)),
        ),
        compiler_params=pltpu.CompilerParams(
            dimension_semantics=("parallel",),   # v7x: shard batch over 2 TCs
            vmem_limit_bytes=32 * 1024 * 1024,   # > v5e's 16 MiB default, fits v7x
        ),
    )(x, w1, b1, w2, b2, w3, b3)


# ---------------------------------------------------------------------------
# Parameters
# ---------------------------------------------------------------------------
def init_params_f32(key):
    """Deterministic synthetic parameters matching the PyTorch module's shapes.

    PyTorch stores Linear weights as [out, in]; we generate directly in [in, out]
    (transposed) form so the kernel does y = x @ W + b.  Returned in float32 for
    the reference path.
    """
    ks = jax.random.split(key, 6)
    s1 = 1.0 / jnp.sqrt(64.0)
    s2 = 1.0 / jnp.sqrt(1024.0)
    s3 = 1.0 / jnp.sqrt(128.0)
    w1 = jax.random.uniform(ks[0], (64, 1024), jnp.float32, -s1, s1)
    b1 = jax.random.uniform(ks[1], (1, 1024), jnp.float32, -s1, s1)
    w2 = jax.random.uniform(ks[2], (1024, 128), jnp.float32, -s2, s2)
    b2 = jax.random.uniform(ks[3], (1, 128), jnp.float32, -s2, s2)
    w3 = jax.random.uniform(ks[4], (128, 10), jnp.float32, -s3, s3)
    b3 = jax.random.uniform(ks[5], (1, 10), jnp.float32, -s3, s3)
    return w1, b1, w2, b2, w3, b3


def prepare_kernel_params(w1, b1, w2, b2, w3, b3):
    """Cast the two large weight matrices to bf16 (halves the dominant weight
    DMA); keep biases and the tiny layer-3 params in f32 for parity."""
    return (w1.astype(jnp.bfloat16), b1,
            w2.astype(jnp.bfloat16), b2,
            w3, b3)


def reference_forward(x, w1, b1, w2, b2, w3, b3):
    h1 = jnp.maximum(x @ w1 + b1, 0.0)
    h2 = jnp.maximum(h1 @ w2 + b2, 0.0)
    return h2 @ w3 + b3


# ---------------------------------------------------------------------------
# Main
# ---------------------------------------------------------------------------
if __name__ == "__main__":
    key = jax.random.PRNGKey(0)
    k_x, k_x2, k_p = jax.random.split(key, 3)

    params_f32 = init_params_f32(k_p)
    params_kernel = prepare_kernel_params(*params_f32)

    # Small batch: single grid step, minimum 8-row tile.
    B_small = 8
    x_small = jax.random.normal(k_x, (B_small, 64), jnp.float32)
    out_small = jax.block_until_ready(mlp_forward(x_small, *params_kernel))
    ref_small = reference_forward(x_small, *params_f32)
    assert out_small.shape == (B_small, 10), out_small.shape
    assert jnp.allclose(out_small, ref_small, atol=2e-2, rtol=2e-2), \
        "small-batch mismatch vs reference"

    # Larger, uneven batch: exercises the 2-step parallel batch grid, the ragged
    # final block (no wrapper-side padding), VMEM-resident weights, and the
    # direct 10-wide f32 output.
    B_big = 200
    x_big = jax.random.normal(k_x2, (B_big, 64), jnp.float32)
    out_big = jax.block_until_ready(mlp_forward(x_big, *params_kernel))
    ref_big = reference_forward(x_big, *params_f32)
    assert out_big.shape == (B_big, 10), out_big.shape
    assert jnp.allclose(out_big, ref_big, atol=2e-2, rtol=2e-2), \
        "large-batch mismatch vs reference"

    print("KERNEL_OK")
</pallas_src>

<mosaic_0001>
module attributes {stable_mosaic.version = 11 : i64} {
  func.func @mlp_kernel(%arg0: i32, %arg1: memref<8x64xf32, #tpu.memory_space<vmem>>, %arg2: memref<64x1024xbf16, #tpu.memory_space<vmem>>, %arg3: memref<1x1024xf32, #tpu.memory_space<vmem>>, %arg4: memref<1024x128xbf16, #tpu.memory_space<vmem>>, %arg5: memref<1x128xf32, #tpu.memory_space<vmem>>, %arg6: memref<128x10xf32, #tpu.memory_space<vmem>>, %arg7: memref<1x10xf32, #tpu.memory_space<vmem>>, %arg8: memref<8x10xf32, #tpu.memory_space<vmem>>) attributes {dimension_semantics = [#tpu.dimension_semantics<parallel>], iteration_bounds = array<i64: 1>, scalar_prefetch = 0 : i64, scratch_operands = 0 : i64, tpu.core_type = #tpu.core_type<tc>, window_params = [{transform_indices = @transform_0, window_bounds = array<i64: 8, 64>}, {pipeline_mode = #tpu.pipeline_mode<synchronous>, transform_indices = @transform_1, window_bounds = array<i64: 64, 1024>}, {pipeline_mode = #tpu.pipeline_mode<synchronous>, transform_indices = @transform_2, window_bounds = array<i64: 1, 1024>}, {pipeline_mode = #tpu.pipeline_mode<synchronous>, transform_indices = @transform_3, window_bounds = array<i64: 1024, 128>}, {pipeline_mode = #tpu.pipeline_mode<synchronous>, transform_indices = @transform_4, window_bounds = array<i64: 1, 128>}, {pipeline_mode = #tpu.pipeline_mode<synchronous>, transform_indices = @transform_5, window_bounds = array<i64: 128, 10>}, {pipeline_mode = #tpu.pipeline_mode<synchronous>, transform_indices = @transform_6, window_bounds = array<i64: 1, 10>}, {transform_indices = @transform_7, window_bounds = array<i64: 8, 10>}]} {
    %c0 = arith.constant 0 : index
    %c0_0 = arith.constant 0 : index
    %0 = vector.load %arg1[%c0, %c0_0] : memref<8x64xf32, #tpu.memory_space<vmem>>, vector<8x64xf32>
    %1 = arith.truncf %0 : vector<8x64xf32> to vector<8x64xbf16>
    %c0_1 = arith.constant 0 : index
    %c0_2 = arith.constant 0 : index
    %2 = vector.load %arg2[%c0_1, %c0_2] : memref<64x1024xbf16, #tpu.memory_space<vmem>>, vector<64x1024xbf16>
    %cst = arith.constant dense<0.000000e+00> : vector<8x1024xf32>
    %3 = tpu.matmul %1, %2, %cst {dimension_numbers = #tpu.dot_dimension_numbers<[1], [0], [0], [1], [0, 0, 1, 1], [], []>} : vector<8x64xbf16>, vector<64x1024xbf16>, vector<8x1024xf32> -> vector<8x1024xf32>
    %c0_3 = arith.constant 0 : index
    %c0_4 = arith.constant 0 : index
    %4 = vector.load %arg3[%c0_3, %c0_4] : memref<1x1024xf32, #tpu.memory_space<vmem>>, vector<1x1024xf32>
    %5 = vector.broadcast %4 : vector<1x1024xf32> to vector<8x1024xf32>
    %6 = arith.addf %3, %5 : vector<8x1024xf32>
    %cst_5 = arith.constant 0.000000e+00 : f32
    %7 = vector.broadcast %cst_5 : f32 to vector<8x1024xf32>
    %8 = arith.maximumf %6, %7 : vector<8x1024xf32>
    %9 = arith.truncf %8 : vector<8x1024xf32> to vector<8x1024xbf16>
    %c0_6 = arith.constant 0 : index
    %c0_7 = arith.constant 0 : index
    %10 = vector.load %arg4[%c0_6, %c0_7] : memref<1024x128xbf16, #tpu.memory_space<vmem>>, vector<1024x128xbf16>
    %cst_8 = arith.constant dense<0.000000e+00> : vector<8x128xf32>
    %11 = tpu.matmul %9, %10, %cst_8 {dimension_numbers = #tpu.dot_dimension_numbers<[1], [0], [0], [1], [0, 0, 1, 1], [], []>} : vector<8x1024xbf16>, vector<1024x128xbf16>, vector<8x128xf32> -> vector<8x128xf32>
    %c0_9 = arith.constant 0 : index
    %c0_10 = arith.constant 0 : index
    %12 = vector.load %arg5[%c0_9, %c0_10] : memref<1x128xf32, #tpu.memory_space<vmem>>, vector<1x128xf32>
    %13 = vector.broadcast %12 : vector<1x128xf32> to vector<8x128xf32>
    %14 = arith.addf %11, %13 : vector<8x128xf32>
    %cst_11 = arith.constant 0.000000e+00 : f32
    %15 = vector.broadcast %cst_11 : f32 to vector<8x128xf32>
    %16 = arith.maximumf %14, %15 : vector<8x128xf32>
    %c0_12 = arith.constant 0 : index
    %c0_13 = arith.constant 0 : index
    %17 = vector.load %arg6[%c0_12, %c0_13] : memref<128x10xf32, #tpu.memory_space<vmem>>, vector<128x10xf32>
    %cst_14 = arith.constant dense<0.000000e+00> : vector<8x10xf32>
    %18 = tpu.matmul %16, %17, %cst_14 {dimension_numbers = #tpu.dot_dimension_numbers<[1], [0], [0], [1], [0, 0, 1, 1], [], []>} : vector<8x128xf32>, vector<128x10xf32>, vector<8x10xf32> -> vector<8x10xf32>
    %c0_15 = arith.constant 0 : index
    %c0_16 = arith.constant 0 : index
    %19 = vector.load %arg7[%c0_15, %c0_16] : memref<1x10xf32, #tpu.memory_space<vmem>>, vector<1x10xf32>
    %20 = vector.broadcast %19 : vector<1x10xf32> to vector<8x10xf32>
    %21 = arith.addf %18, %20 : vector<8x10xf32>
    %c0_17 = arith.constant 0 : index
    %c0_18 = arith.constant 0 : index
    %22 = vector.load %arg8[%c0_17, %c0_18] : memref<8x10xf32, #tpu.memory_space<vmem>>, vector<8x10xf32>
    tpu.vector_store %arg8[%c0_17, %c0_18], %21 {strides = array<i32>} : memref<8x10xf32, #tpu.memory_space<vmem>>, vector<8x10xf32>,
    return
  }
  func.func @transform_0(%arg0: i32) -> (i32, i32) {
    %c0_i32 = arith.constant 0 : i32
    %c0_i32_0 = arith.constant 0 : i32
    return %arg0, %c0_i32 : i32, i32
  }
  func.func @transform_1(%arg0: i32) -> (i32, i32) {
    %c0_i32 = arith.constant 0 : i32
    %c0_i32_0 = arith.constant 0 : i32
    %c0_i32_1 = arith.constant 0 : i32
    return %c0_i32, %c0_i32_0 : i32, i32
  }
  func.func @transform_2(%arg0: i32) -> (i32, i32) {
    %c0_i32 = arith.constant 0 : i32
    %c0_i32_0 = arith.constant 0 : i32
    %c0_i32_1 = arith.constant 0 : i32
    return %c0_i32, %c0_i32_0 : i32, i32
  }
  func.func @transform_3(%arg0: i32) -> (i32, i32) {
    %c0_i32 = arith.constant 0 : i32
    %c0_i32_0 = arith.constant 0 : i32
    %c0_i32_1 = arith.constant 0 : i32
    return %c0_i32, %c0_i32_0 : i32, i32
  }
  func.func @transform_4(%arg0: i32) -> (i32, i32) {
    %c0_i32 = arith.constant 0 : i32
    %c0_i32_0 = arith.constant 0 : i32
    %c0_i32_1 = arith.constant 0 : i32
    return %c0_i32, %c0_i32_0 : i32, i32
  }
  func.func @transform_5(%arg0: i32) -> (i32, i32) {
    %c0_i32 = arith.constant 0 : i32
    %c0_i32_0 = arith.constant 0 : i32
    %c0_i32_1 = arith.constant 0 : i32
    return %c0_i32, %c0_i32_0 : i32, i32
  }
  func.func @transform_6(%arg0: i32) -> (i32, i32) {
    %c0_i32 = arith.constant 0 : i32
    %c0_i32_0 = arith.constant 0 : i32
    %c0_i32_1 = arith.constant 0 : i32
    return %c0_i32, %c0_i32_0 : i32, i32
  }
  func.func @transform_7(%arg0: i32) -> (i32, i32) {
    %c0_i32 = arith.constant 0 : i32
    %c0_i32_0 = arith.constant 0 : i32
    return %arg0, %c0_i32 : i32, i32
  }
}

</mosaic_0001>

<llo_original>
// kernel: mlp_forward.1
$region0: #{mlp_forward.1}
  #allocation0 [shape = 'u32[]', space=smem, size = 0x4, offset = 0x4, fixed_abs, tag = 'smem constant byte address 0x4 - core index']
  #allocation1 [shape = 'u32[144,128]{1,0:T(1,128)}', space=vmem, size = 0x12000, scoped, tag = 'internal scratch']
  %s0 = inlined_call_operand.vmem [shape: f32[8,64], index: 0, kind: input, shape index: {}]
  %s1 = inlined_call_operand.hbm [shape: bf16[64,1024], index: 1, kind: input, shape index: {}]
  %s2 = inlined_call_operand.vmem [shape: f32[1,1024], index: 2, kind: input, shape index: {}]
  %s3 = inlined_call_operand.hbm [shape: bf16[1024,128], index: 3, kind: input, shape index: {}]
  %s4 = inlined_call_operand.vmem [shape: f32[1,128], index: 4, kind: input, shape index: {}]
  %s5 = inlined_call_operand.vmem [shape: f32[128,10], index: 5, kind: input, shape index: {}]
  %s6 = inlined_call_operand.vmem [shape: f32[1,10], index: 6, kind: input, shape index: {}]
  %s7 = inlined_call_operand.hbm [shape: f32[8,10], index: 7, kind: output, shape index: {}]
  %s8 = sld [smem:[#allocation0]]
  $region46: #{mlp_forward.1} parent=0
    _
  %s10 = ssub.s32 1, %s8
  %s11 = scalar_select 0, %s10, %s8
  $region1: #{mlp_forward.1} parent=0
    #allocation2 [shape = 'u8[131072]{0}', space=vmem, size = 0x20000, scoped, tag = 'input window, operand 1, single buffered']
    #allocation3 [shape = 's32[1]{0}', space=sflag, size = 0x4, scoped, tag = 'scoped memory for mlp_forward.1']
    #allocation4 [shape = 's32[1]{0}', space=sflag, size = 0x4, scoped, tag = 'scoped memory for mlp_forward.1']
    #allocation5 [shape = 'u8[262144]{0}', space=vmem, size = 0x40000, scoped, tag = 'input window, operand 3, single buffered']
    #allocation6 [shape = 's32[1]{0}', space=sflag, size = 0x4, scoped, tag = 'scoped memory for mlp_forward.1']
    #allocation7 [shape = 'u8[4096]{0}', space=vmem, size = 0x1000, scoped, tag = 'output window, operand 0, single buffered']
    %12 = vsyncpa [#allocation3], 0
    %13 = vsyncpa [#allocation6], 0
    %14 = vsyncpa [#allocation4], 0
    // Predicated region
    $region2: #{mlp_forward.1} parent=1 // pred_check
      _
    $region3: #{mlp_forward.1} parent=1 // pred_check_branch
      %16 = sbr.rel (0) target = $region5
    $region4: #{mlp_forward.1} parent=1 // pred_region
      _
    $region5: #{mlp_forward.1} parent=1 // pred_fallthru
      _
    // Predicated region
    $region6: #{mlp_forward.1} parent=1 // pred_check
      _
    $region7: #{mlp_forward.1} parent=1 // pred_check_branch
      %18 = sbr.rel (0) target = $region9
    $region8: #{mlp_forward.1} parent=1 // pred_region
      %s20 = ssub.s32 4096, 4096
      %21 = vsyncadd [#allocation3], %s20
      %s22 = sshll.u32 [#allocation2], 4
      %s23 = int_to_ptr.vmem [resolvable:$true] %s22
      %28 = dma.hbm_to_vmem [thread:$0]  %s1, 4096, %s23, [#allocation3], 512, 512, 32
    $region9: #{mlp_forward.1} parent=1 // pred_fallthru
      _
    // Predicated region
    $region10: #{mlp_forward.1} parent=1 // pred_check
      _
    $region11: #{mlp_forward.1} parent=1 // pred_check_branch
      %30 = sbr.rel (0) target = $region13
    $region12: #{mlp_forward.1} parent=1 // pred_region
      _
    $region13: #{mlp_forward.1} parent=1 // pred_fallthru
      _
    // Predicated region
    $region14: #{mlp_forward.1} parent=1 // pred_check
      _
    $region15: #{mlp_forward.1} parent=1 // pred_check_branch
      %32 = sbr.rel (0) target = $region17
    $region16: #{mlp_forward.1} parent=1 // pred_region
      %s34 = ssub.s32 8192, 8192
      %35 = vsyncadd [#allocation6], %s34
      %s36 = sshll.u32 [#allocation5], 4
      %s37 = int_to_ptr.vmem [resolvable:$true] %s36
      %42 = dma.hbm_to_vmem [thread:$0]  %s3, 8192, %s37, [#allocation6], 64, 64, 4
    $region17: #{mlp_forward.1} parent=1 // pred_fallthru
      _
    // Predicated region
    $region18: #{mlp_forward.1} parent=1 // pred_check
      _
    $region19: #{mlp_forward.1} parent=1 // pred_check_branch
      %44 = sbr.rel (0) target = $region21
    $region20: #{mlp_forward.1} parent=1 // pred_region
      _
    $region21: #{mlp_forward.1} parent=1 // pred_fallthru
      _
    // Predicated region
    $region22: #{mlp_forward.1} parent=1 // pred_check
      _
    $region23: #{mlp_forward.1} parent=1 // pred_check_branch
      %46 = sbr.rel (0) target = $region25
    $region24: #{mlp_forward.1} parent=1 // pred_region
      _
    $region25: #{mlp_forward.1} parent=1 // pred_fallthru
      _
    // Predicated region
    $region26: #{mlp_forward.1} parent=1 // pred_check
      _
    $region27: #{mlp_forward.1} parent=1 // pred_check_branch
      %48 = sbr.rel (0) target = $region29
    $region28: #{mlp_forward.1} parent=1 // pred_region
      _
    $region29: #{mlp_forward.1} parent=1 // pred_fallthru
      _
    // Predicated region
    $region30: #{mlp_forward.1} parent=1 // pred_check
      _
    $region31: #{mlp_forward.1} parent=1 // pred_check_branch
      %50 = sbr.rel (0) target = $region33
    $region32: #{mlp_forward.1} parent=1 // pred_region
      %51 = dma.done [#allocation3], 4096
    $region33: #{mlp_forward.1} parent=1 // pred_fallthru
      _
    // Predicated region
    $region34: #{mlp_forward.1} parent=1 // pred_check
      _
    $region35: #{mlp_forward.1} parent=1 // pred_check_branch
      %53 = sbr.rel (0) target = $region37
    $region36: #{mlp_forward.1} parent=1 // pred_region
      %54 = dma.done [#allocation6], 8192
    $region37: #{mlp_forward.1} parent=1 // pred_fallthru
      _
    %v56 = vld [vmem:[%s0] sm:$0xff]
    %v57 = vpack.c.bf16 %v56, %v56
    %v58 = vld [vmem:[#allocation2] sm:$0xff]
    %v59 = vld [vmem:[#allocation2 + $0x8] sm:$0xff]
    %v60 = vld [vmem:[#allocation2 + $0x10] sm:$0xff]
    %v61 = vld [vmem:[#allocation2 + $0x18] sm:$0xff]
    %v62 = vld [vmem:[#allocation2 + $0x20] sm:$0xff]
    %v63 = vld [vmem:[#allocation2 + $0x28] sm:$0xff]
    %v64 = vld [vmem:[#allocation2 + $0x30] sm:$0xff]
    %v65 = vld [vmem:[#allocation2 + $0x38] sm:$0xff]
    %v66 = vld [vmem:[#allocation2 + $0x40] sm:$0xff]
    %v67 = vld [vmem:[#allocation2 + $0x48] sm:$0xff]
    %v68 = vld [vmem:[#allocation2 + $0x50] sm:$0xff]
    %v69 = vld [vmem:[#allocation2 + $0x58] sm:$0xff]
    %v70 = vld [vmem:[#allocation2 + $0x60] sm:$0xff]
    %v71 = vld [vmem:[#allocation2 + $0x68] sm:$0xff]
    %v72 = vld [vmem:[#allocation2 + $0x70] sm:$0xff]
    %v73 = vld [vmem:[#allocation2 + $0x78] sm:$0xff]
    %v74 = vld [vmem:[#allocation2 + $0x80] sm:$0xff]
    %v75 = vld [vmem:[#allocation2 + $0x88] sm:$0xff]
    %v76 = vld [vmem:[#allocation2 + $0x90] sm:$0xff]
    %v77 = vld [vmem:[#allocation2 + $0x98] sm:$0xff]
    %v78 = vld [vmem:[#allocation2 + $0xa0] sm:$0xff]
    %v79 = vld [vmem:[#allocation2 + $0xa8] sm:$0xff]
    %v80 = vld [vmem:[#allocation2 + $0xb0] sm:$0xff]
    %v81 = vld [vmem:[#allocation2 + $0xb8] sm:$0xff]
    %v82 = vld [vmem:[#allocation2 + $0xc0] sm:$0xff]
    %v83 = vld [vmem:[#allocation2 + $0xc8] sm:$0xff]
    %v84 = vld [vmem:[#allocation2 + $0xd0] sm:$0xff]
    %v85 = vld [vmem:[#allocation2 + $0xd8] sm:$0xff]
    %v86 = vld [vmem:[#allocation2 + $0xe0] sm:$0xff]
    %v87 = vld [vmem:[#allocation2 + $0xe8] sm:$0xff]
    %v88 = vld [vmem:[#allocation2 + $0xf0] sm:$0xff]
    %v89 = vld [vmem:[#allocation2 + $0xf8] sm:$0xff]
    %v90 = vld [vmem:[%s2] sm:$0xff]
    %v92 = vlaneseq
    %v93 = vshrl.u32 %v92, 7
    %v94 = vsub.s32 0, %v93
    %v95 = vrot.slane %v90, %v94
    %v96 = vlaneseq
    %v97 = vshrl.u32 %v96, 7
    %v98 = vsub.s32 1, %v97
    %v99 = vrot.slane %v90, %v98
    %v100 = vlaneseq
    %v101 = vshrl.u32 %v100, 7
    %v102 = vsub.s32 2, %v101
    %v103 = vrot.slane %v90, %v102
    %v104 = vlaneseq
    %v105 = vshrl.u32 %v104, 7
    %v106 = vsub.s32 3, %v105
    %v107 = vrot.slane %v90, %v106
    %v108 = vlaneseq
    %v109 = vshrl.u32 %v108, 7
    %v110 = vsub.s32 4, %v109
    %v111 = vrot.slane %v90, %v110
    %v112 = vlaneseq
    %v113 = vshrl.u32 %v112, 7
    %v114 = vsub.s32 5, %v113
    %v115 = vrot.slane %v90, %v114
    %v116 = vlaneseq
    %v117 = vshrl.u32 %v116, 7
    %v118 = vsub.s32 6, %v117
    %v119 = vrot.slane %v90, %v118
    %v120 = vlaneseq
    %v121 = vshrl.u32 %v120, 7
    %v122 = vsub.s32 7, %v121
    %v123 = vrot.slane %v90, %v122
    %v164 = vunpack.c.l.b16 %v58
    %v165 = vunpack.c.h.b16 %v58
    %v166 = vunpack.c.l.b16 %v59
    %v167 = vunpack.c.h.b16 %v59
    %v168 = vunpack.c.l.b16 %v60
    %v169 = vunpack.c.h.b16 %v60
    %v170 = vunpack.c.l.b16 %v61
    %v171 = vunpack.c.h.b16 %v61
    %v172 = vunpack.c.l.b16 %v62
    %v173 = vunpack.c.h.b16 %v62
    %v174 = vunpack.c.l.b16 %v63
    %v175 = vunpack.c.h.b16 %v63
    %v176 = vunpack.c.l.b16 %v64
    %v177 = vunpack.c.h.b16 %v64
    %v178 = vunpack.c.l.b16 %v65
    %v179 = vunpack.c.h.b16 %v65
    %v180 = vunpack.c.l.b16 %v66
    %v181 = vunpack.c.h.b16 %v66
    %v182 = vunpack.c.l.b16 %v67
    %v183 = vunpack.c.h.b16 %v67
    %v184 = vunpack.c.l.b16 %v68
    %v185 = vunpack.c.h.b16 %v68
    %v186 = vunpack.c.l.b16 %v69
    %v187 = vunpack.c.h.b16 %v69
    %v188 = vunpack.c.l.b16 %v70
    %v189 = vunpack.c.h.b16 %v70
    %v190 = vunpack.c.l.b16 %v71
    %v191 = vunpack.c.h.b16 %v71
    %v192 = vunpack.c.l.b16 %v72
    %v193 = vunpack.c.h.b16 %v72
    %v194 = vunpack.c.l.b16 %v73
    %v195 = vunpack.c.h.b16 %v73
    %v196 = vunpack.c.l.b16 %v74
    %v197 = vunpack.c.h.b16 %v74
    %v198 = vunpack.c.l.b16 %v75
    %v199 = vunpack.c.h.b16 %v75
    %v200 = vunpack.c.l.b16 %v76
    %v201 = vunpack.c.h.b16 %v76
    %v202 = vunpack.c.l.b16 %v77
    %v203 = vunpack.c.h.b16 %v77
    %v204 = vunpack.c.l.b16 %v78
    %v205 = vunpack.c.h.b16 %v78
    %v206 = vunpack.c.l.b16 %v79
    %v207 = vunpack.c.h.b16 %v79
    %v208 = vunpack.c.l.b16 %v80
    %v209 = vunpack.c.h.b16 %v80
    %v210 = vunpack.c.l.b16 %v81
    %v211 = vunpack.c.h.b16 %v81
    %v212 = vunpack.c.l.b16 %v82
    %v213 = vunpack.c.h.b16 %v82
    %v214 = vunpack.c.l.b16 %v83
    %v215 = vunpack.c.h.b16 %v83
    %v216 = vunpack.c.l.b16 %v84
    %v217 = vunpack.c.h.b16 %v84
    %v218 = vunpack.c.l.b16 %v85
    %v219 = vunpack.c.h.b16 %v85
    %v220 = vunpack.c.l.b16 %v86
    %v221 = vunpack.c.h.b16 %v86
    %v222 = vunpack.c.l.b16 %v87
    %v223 = vunpack.c.h.b16 %v87
    %v224 = vunpack.c.l.b16 %v88
    %v225 = vunpack.c.h.b16 %v88
    %v226 = vunpack.c.l.b16 %v89
    %v227 = vunpack.c.h.b16 %v89
    %v228 = vpack.c.b16 %v172, %v164
    %v229 = vpack.c.b16 %v173, %v165
    %v230 = vpack.c.b16 %v174, %v166
    %v231 = vpack.c.b16 %v175, %v167
    %v232 = vpack.c.b16 %v176, %v168
    %v233 = vpack.c.b16 %v177, %v169
    %v234 = vpack.c.b16 %v178, %v170
    %v235 = vpack.c.b16 %v179, %v171
    %v236 = vpack.c.b16 %v188, %v180
    %v237 = vpack.c.b16 %v189, %v181
    %v238 = vpack.c.b16 %v190, %v182
    %v239 = vpack.c.b16 %v191, %v183
    %v240 = vpack.c.b16 %v192, %v184
    %v241 = vpack.c.b16 %v193, %v185
    %v242 = vpack.c.b16 %v194, %v186
    %v243 = vpack.c.b16 %v195, %v187
    %v244 = vpack.c.b16 %v204, %v196
    %v245 = vpack.c.b16 %v205, %v197
    %v246 = vpack.c.b16 %v206, %v198
    %v247 = vpack.c.b16 %v207, %v199
    %v248 = vpack.c.b16 %v208, %v200
    %v249 = vpack.c.b16 %v209, %v201
    %v250 = vpack.c.b16 %v210, %v202
    %v251 = vpack.c.b16 %v211, %v203
    %v252 = vpack.c.b16 %v220, %v212
    %v253 = vpack.c.b16 %v221, %v213
    %v254 = vpack.c.b16 %v222, %v214
    %v255 = vpack.c.b16 %v223, %v215
    %v256 = vpack.c.b16 %v224, %v216
    %v257 = vpack.c.b16 %v225, %v217
    %v258 = vpack.c.b16 %v226, %v218
    %v259 = vpack.c.b16 %v227, %v219
    %vm292 = vcmask 523264
    %v294 = vsel %vm292, %v57, 0
    %296 = vmatprep.subr.bf16.mxu0 %v229
    %297 = vmatpush1.bf16.msra.mxu0 %v228
    %298 = vmatprep.subr.bf16.mxu0 %v237
    %299 = vmatpush1.bf16.msra.mxu0 %v236
    %300 = vmatprep.subr.bf16.mxu0 %v245
    %301 = vmatpush1.bf16.msra.mxu0 %v244
    %302 = vmatprep.subr.bf16.mxu0 %v253
    %303 = vmatpush1.bf16.msra.mxu0 %v252
    %304 = vmatprep.subr.bf16.mxu0 0
    %305 = vmatpush1.bf16.msra.mxu0 0
    %306 = vmatprep.subr.bf16.mxu0 0
    %307 = vmatpush1.bf16.msra.mxu0 0
    %308 = vmatprep.subr.bf16.mxu0 0
    %309 = vmatpush1.bf16.msra.mxu0 0
    %310 = vmatprep.subr.bf16.mxu0 0
    %311 = vmatpush1.bf16.msra.mxu0 0
    %312 = vmatprep.subr.bf16.mxu0 0
    %313 = vmatpush1.bf16.msra.mxu0 0
    %314 = vmatprep.subr.bf16.mxu0 0
    %315 = vmatpush1.bf16.msra.mxu0 0
    %316 = vmatprep.subr.bf16.mxu0 0
    %317 = vmatpush1.bf16.msra.mxu0 0
    %318 = vmatprep.subr.bf16.mxu0 0
    %319 = vmatpush1.bf16.msra.mxu0 0
    %320 = vmatprep.subr.bf16.mxu0 0
    %321 = vmatpush1.bf16.msra.mxu0 0
    %322 = vmatprep.subr.bf16.mxu0 0
    %323 = vmatpush1.bf16.msra.mxu0 0
    %324 = vmatprep.subr.bf16.mxu0 0
    %325 = vmatpush1.bf16.msra.mxu0 0
    %326 = vmatprep.subr.bf16.mxu0 0
    %327 = vmatpush1.bf16.msra.mxu0 0
    %328 = vmatprep.mubr.bf16.mxu0 0
    %329 = vmatmul.mubr.bf16.gmra.mrb[0].mxu0 %v294
    %v330 = vpop.f32.mrb[0].mxu0
    %v331 = vadd.f32 %v95, %v330
    %v332 = vpop.f32.mrb[0].mxu0
    %v333 = vadd.f32 %v99, %v332
    %v334 = vpop.f32.mrb[0].mxu0
    %v335 = vpop.f32.mrb[0].mxu0
    %336 = vdwg.mxu0
    %337 = vmatprep.subr.bf16.mxu0 %v231
    %338 = vmatpush1.bf16.msra.mxu0 %v230
    %339 = vmatprep.subr.bf16.mxu0 %v239
    %340 = vmatpush1.bf16.msra.mxu0 %v238
    %341 = vmatprep.subr.bf16.mxu0 %v247
    %342 = vmatpush1.bf16.msra.mxu0 %v246
    %343 = vmatprep.subr.bf16.mxu0 %v255
    %344 = vmatpush1.bf16.msra.mxu0 %v254
    %345 = vmatprep.subr.bf16.mxu0 0
    %346 = vmatpush1.bf16.msra.mxu0 0
    %347 = vmatprep.subr.bf16.mxu0 0
    %348 = vmatpush1.bf16.msra.mxu0 0
    %349 = vmatprep.subr.bf16.mxu0 0
    %350 = vmatpush1.bf16.msra.mxu0 0
    %351 = vmatprep.subr.bf16.mxu0 0
    %352 = vmatpush1.bf16.msra.mxu0 0
    %353 = vmatprep.subr.bf16.mxu0 0
    %354 = vmatpush1.bf16.msra.mxu0 0
    %355 = vmatprep.subr.bf16.mxu0 0
    %356 = vmatpush1.bf16.msra.mxu0 0
    %357 = vmatprep.subr.bf16.mxu0 0
    %358 = vmatpush1.bf16.msra.mxu0 0
    %359 = vmatprep.subr.bf16.mxu0 0
    %360 = vmatpush1.bf16.msra.mxu0 0
    %361 = vmatprep.subr.bf16.mxu0 0
    %362 = vmatpush1.bf16.msra.mxu0 0
    %363 = vmatprep.subr.bf16.mxu0 0
    %364 = vmatpush1.bf16.msra.mxu0 0
    %365 = vmatprep.subr.bf16.mxu0 0
    %366 = vmatpush1.bf16.msra.mxu0 0
    %367 = vmatprep.subr.bf16.mxu0 0
    %368 = vmatpush1.bf16.msra.mxu0 0
    %369 = vmatprep.mubr.bf16.mxu0 0
    %370 = vmatmul.mubr.bf16.gmra.mrb[0].mxu0 %v294
    %v371 = vpop.f32.mrb[0].mxu0
    %v372 = vadd.f32 %v103, %v371
    %v373 = vpop.f32.mrb[0].mxu0
    %v374 = vadd.f32 %v107, %v373
    %v375 = vpop.f32.mrb[0].mxu0
    %v376 = vpop.f32.mrb[0].mxu0
    %377 = vdwg.mxu0
    %378 = vmatprep.subr.bf16.mxu0 %v233
    %379 = vmatpush1.bf16.msra.mxu0 %v232
    %380 = vmatprep.subr.bf16.mxu0 %v241
    %381 = vmatpush1.bf16.msra.mxu0 %v240
    %382 = vmatprep.subr.bf16.mxu0 %v249
    %383 = vmatpush1.bf16.msra.mxu0 %v248
    %384 = vmatprep.subr.bf16.mxu0 %v257
    %385 = vmatpush1.bf16.msra.mxu0 %v256
    %386 = vmatprep.subr.bf16.mxu0 0
    %387 = vmatpush1.bf16.msra.mxu0 0
    %388 = vmatprep.subr.bf16.mxu0 0
    %389 = vmatpush1.bf16.msra.mxu0 0
    %390 = vmatprep.subr.bf16.mxu0 0
    %391 = vmatpush1.bf16.msra.mxu0 0
    %392 = vmatprep.subr.bf16.mxu0 0
    %393 = vmatpush1.bf16.msra.mxu0 0
    %394 = vmatprep.subr.bf16.mxu0 0
    %395 = vmatpush1.bf16.msra.mxu0 0
    %396 = vmatprep.subr.bf16.mxu0 0
    %397 = vmatpush1.bf16.msra.mxu0 0
    %398 = vmatprep.subr.bf16.mxu0 0
    %399 = vmatpush1.bf16.msra.mxu0 0
    %400 = vmatprep.subr.bf16.mxu0 0
    %401 = vmatpush1.bf16.msra.mxu0 0
    %402 = vmatprep.subr.bf16.mxu0 0
    %403 = vmatpush1.bf16.msra.mxu0 0
    %404 = vmatprep.subr.bf16.mxu0 0
    %405 = vmatpush1.bf16.msra.mxu0 0
    %406 = vmatprep.subr.bf16.mxu0 0
    %407 = vmatpush1.bf16.msra.mxu0 0
    %408 = vmatprep.subr.bf16.mxu0 0
    %409 = vmatpush1.bf16.msra.mxu0 0
    %410 = vmatprep.mubr.bf16.mxu0 0
    %411 = vmatmul.mubr.bf16.gmra.mrb[0].mxu0 %v294
    %v412 = vpop.f32.mrb[0].mxu0
    %v413 = vadd.f32 %v111, %v412
    %v414 = vpop.f32.mrb[0].mxu0
    %v415 = vadd.f32 %v115, %v414
    %v416 = vpop.f32.mrb[0].mxu0
    %v417 = vpop.f32.mrb[0].mxu0
    %418 = vdwg.mxu0
    %419 = vmatprep.subr.bf16.mxu0 %v235
    %420 = vmatpush1.bf16.msra.mxu0 %v234
    %421 = vmatprep.subr.bf16.mxu0 %v243
    %422 = vmatpush1.bf16.msra.mxu0 %v242
    %423 = vmatprep.subr.bf16.mxu0 %v251
    %424 = vmatpush1.bf16.msra.mxu0 %v250
    %425 = vmatprep.subr.bf16.mxu0 %v259
    %426 = vmatpush1.bf16.msra.mxu0 %v258
    %427 = vmatprep.subr.bf16.mxu0 0
    %428 = vmatpush1.bf16.msra.mxu0 0
    %429 = vmatprep.subr.bf16.mxu0 0
    %430 = vmatpush1.bf16.msra.mxu0 0
    %431 = vmatprep.subr.bf16.mxu0 0
    %432 = vmatpush1.bf16.msra.mxu0 0
    %433 = vmatprep.subr.bf16.mxu0 0
    %434 = vmatpush1.bf16.msra.mxu0 0
    %435 = vmatprep.subr.bf16.mxu0 0
    %436 = vmatpush1.bf16.msra.mxu0 0
    %437 = vmatprep.subr.bf16.mxu0 0
    %438 = vmatpush1.bf16.msra.mxu0 0
    %439 = vmatprep.subr.bf16.mxu0 0
    %440 = vmatpush1.bf16.msra.mxu0 0
    %441 = vmatprep.subr.bf16.mxu0 0
    %442 = vmatpush1.bf16.msra.mxu0 0
    %443 = vmatprep.subr.bf16.mxu0 0
    %444 = vmatpush1.bf16.msra.mxu0 0
    %445 = vmatprep.subr.bf16.mxu0 0
    %446 = vmatpush1.bf16.msra.mxu0 0
    %447 = vmatprep.subr.bf16.mxu0 0
    %448 = vmatpush1.bf16.msra.mxu0 0
    %449 = vmatprep.subr.bf16.mxu0 0
    %450 = vmatpush1.bf16.msra.mxu0 0
    %451 = vmatprep.mubr.bf16.mxu0 0
    %452 = vmatmul.mubr.bf16.gmra.mrb[0].mxu0 %v294
    %v453 = vpop.f32.mrb[0].mxu0
    %v454 = vadd.f32 %v119, %v453
    %v455 = vpop.f32.mrb[0].mxu0
    %v456 = vadd.f32 %v123, %v455
    %v457 = vpop.f32.mrb[0].mxu0
    %v458 = vpop.f32.mrb[0].mxu0
    %459 = vdwg.mxu0
    %v460 = vmax.f32 %v331, 0.0
    %v461 = vmax.f32 %v333, 0.0
    %v462 = vmax.f32 %v372, 0.0
    %v463 = vmax.f32 %v374, 0.0
    %v464 = vmax.f32 %v413, 0.0
    %v465 = vmax.f32 %v415, 0.0
    %v466 = vmax.f32 %v454, 0.0
    %v467 = vmax.f32 %v456, 0.0
    %v468 = vpack.c.bf16 %v460, %v460
    %v469 = vpack.c.bf16 %v461, %v461
    %v470 = vpack.c.bf16 %v462, %v462
    %v471 = vpack.c.bf16 %v463, %v463
    %v472 = vpack.c.bf16 %v464, %v464
    %v473 = vpack.c.bf16 %v465, %v465
    %v474 = vpack.c.bf16 %v466, %v466
    %v475 = vpack.c.bf16 %v467, %v467
    %v476 = vld [vmem:[#allocation5] sm:$0xf]
    %v477 = vld [vmem:[#allocation5 + $0x4] sm:$0xf]
    %v478 = vld [vmem:[#allocation5 + $0x8] sm:$0xf]
    %v479 = vld [vmem:[#allocation5 + $0xc] sm:$0xf]
    %v480 = vld [vmem:[#allocation5 + $0x10] sm:$0xf]
    %v481 = vld [vmem:[#allocation5 + $0x14] sm:$0xf]
    %v482 = vld [vmem:[#allocation5 + $0x18] sm:$0xf]
    %v483 = vld [vmem:[#allocation5 + $0x1c] sm:$0xf]
    %v484 = vld [vmem:[#allocation5 + $0x20] sm:$0xf]
    %v485 = vld [vmem:[#allocation5 + $0x24] sm:$0xf]
    %v486 = vld [vmem:[#allocation5 + $0x28] sm:$0xf]
    %v487 = vld [vmem:[#allocation5 + $0x2c] sm:$0xf]
    %v488 = vld [vmem:[#allocation5 + $0x30] sm:$0xf]
    %v489 = vld [vmem:[#allocation5 + $0x34] sm:$0xf]
    %v490 = vld [vmem:[#allocation5 + $0x38] sm:$0xf]
    %v491 = vld [vmem:[#allocation5 + $0x3c] sm:$0xf]
    %v492 = vld [vmem:[#allocation5 + $0x40] sm:$0xf]
    %v493 = vld [vmem:[#allocation5 + $0x44] sm:$0xf]
    %v494 = vld [vmem:[#allocation5 + $0x48] sm:$0xf]
    %v495 = vld [vmem:[#allocation5 + $0x4c] sm:$0xf]
    %v496 = vld [vmem:[#allocation5 + $0x50] sm:$0xf]
    %v497 = vld [vmem:[#allocation5 + $0x54] sm:$0xf]
    %v498 = vld [vmem:[#allocation5 + $0x58] sm:$0xf]
    %v499 = vld [vmem:[#allocation5 + $0x5c] sm:$0xf]
    %v500 = vld [vmem:[#allocation5 + $0x60] sm:$0xf]
    %v501 = vld [vmem:[#allocation5 + $0x64] sm:$0xf]
    %v502 = vld [vmem:[#allocation5 + $0x68] sm:$0xf]
    %v503 = vld [vmem:[#allocation5 + $0x6c] sm:$0xf]
    %v504 = vld [vmem:[#allocation5 + $0x70] sm:$0xf]
    %v505 = vld [vmem:[#allocation5 + $0x74] sm:$0xf]
    %v506 = vld [vmem:[#allocation5 + $0x78] sm:$0xf]
    %v507 = vld [vmem:[#allocation5 + $0x7c] sm:$0xf]
    %v508 = vld [vmem:[#allocation5 + $0x80] sm:$0xf]
    %v509 = vld [vmem:[#allocation5 + $0x84] sm:$0xf]
    %v510 = vld [vmem:[#allocation5 + $0x88] sm:$0xf]
    %v511 = vld [vmem:[#allocation5 + $0x8c] sm:$0xf]
    %v512 = vld [vmem:[#allocation5 + $0x90] sm:$0xf]
    %v513 = vld [vmem:[#allocation5 + $0x94] sm:$0xf]
    %v514 = vld [vmem:[#allocation5 + $0x98] sm:$0xf]
    %v515 = vld [vmem:[#allocation5 + $0x9c] sm:$0xf]
    %v516 = vld [vmem:[#allocation5 + $0xa0] sm:$0xf]
    %v517 = vld [vmem:[#allocation5 + $0xa4] sm:$0xf]
    %v518 = vld [vmem:[#allocation5 + $0xa8] sm:$0xf]
    %v519 = vld [vmem:[#allocation5 + $0xac] sm:$0xf]
    %v520 = vld [vmem:[#allocation5 + $0xb0] sm:$0xf]
    %v521 = vld [vmem:[#allocation5 + $0xb4] sm:$0xf]
    %v522 = vld [vmem:[#allocation5 + $0xb8] sm:$0xf]
    %v523 = vld [vmem:[#allocation5 + $0xbc] sm:$0xf]
    %v524 = vld [vmem:[#allocation5 + $0xc0] sm:$0xf]
    %v525 = vld [vmem:[#allocation5 + $0xc4] sm:$0xf]
    %v526 = vld [vmem:[#allocation5 + $0xc8] sm:$0xf]
    %v527 = vld [vmem:[#allocation5 + $0xcc] sm:$0xf]
    %v528 = vld [vmem:[#allocation5 + $0xd0] sm:$0xf]
    %v529 = vld [vmem:[#allocation5 + $0xd4] sm:$0xf]
    %v530 = vld [vmem:[#allocation5 + $0xd8] sm:$0xf]
    %v531 = vld [vmem:[#allocation5 + $0xdc] sm:$0xf]
    %v532 = vld [vmem:[#allocation5 + $0xe0] sm:$0xf]
    %v533 = vld [vmem:[#allocation5 + $0xe4] sm:$0xf]
    %v534 = vld [vmem:[#allocation5 + $0xe8] sm:$0xf]
    %v535 = vld [vmem:[#allocation5 + $0xec] sm:$0xf]
    %v536 = vld [vmem:[#allocation5 + $0xf0] sm:$0xf]
    %v537 = vld [vmem:[#allocation5 + $0xf4] sm:$0xf]
    %v538 = vld [vmem:[#allocation5 + $0xf8] sm:$0xf]
    %v539 = vld [vmem:[#allocation5 + $0xfc] sm:$0xf]
    %v540 = vld [vmem:[#allocation5 + $0x100] sm:$0xf]
    %v541 = vld [vmem:[#allocation5 + $0x104] sm:$0xf]
    %v542 = vld [vmem:[#allocation5 + $0x108] sm:$0xf]
    %v543 = vld [vmem:[#allocation5 + $0x10c] sm:$0xf]
    %v544 = vld [vmem:[#allocation5 + $0x110] sm:$0xf]
    %v545 = vld [vmem:[#allocation5 + $0x114] sm:$0xf]
    %v546 = vld [vmem:[#allocation5 + $0x118] sm:$0xf]
    %v547 = vld [vmem:[#allocation5 + $0x11c] sm:$0xf]
    %v548 = vld [vmem:[#allocation5 + $0x120] sm:$0xf]
    %v549 = vld [vmem:[#allocation5 + $0x124] sm:$0xf]
    %v550 = vld [vmem:[#allocation5 + $0x128] sm:$0xf]
    %v551 = vld [vmem:[#allocation5 + $0x12c] sm:$0xf]
    %v552 = vld [vmem:[#allocation5 + $0x130] sm:$0xf]
    %v553 = vld [vmem:[#allocation5 + $0x134] sm:$0xf]
    %v554 = vld [vmem:[#allocation5 + $0x138] sm:$0xf]
    %v555 = vld [vmem:[#allocation5 + $0x13c] sm:$0xf]
    %v556 = vld [vmem:[#allocation5 + $0x140] sm:$0xf]
    %v557 = vld [vmem:[#allocation5 + $0x144] sm:$0xf]
    %v558 = vld [vmem:[#allocation5 + $0x148] sm:$0xf]
    %v559 = vld [vmem:[#allocation5 + $0x14c] sm:$0xf]
    %v560 = vld [vmem:[#allocation5 + $0x150] sm:$0xf]
    %v561 = vld [vmem:[#allocation5 + $0x154] sm:$0xf]
    %v562 = vld [vmem:[#allocation5 + $0x158] sm:$0xf]
    %v563 = vld [vmem:[#allocation5 + $0x15c] sm:$0xf]
    %v564 = vld [vmem:[#allocation5 + $0x160] sm:$0xf]
    %v565 = vld [vmem:[#allocation5 + $0x164] sm:$0xf]
    %v566 = vld [vmem:[#allocation5 + $0x168] sm:$0xf]
    %v567 = vld [vmem:[#allocation5 + $0x16c] sm:$0xf]
    %v568 = vld [vmem:[#allocation5 + $0x170] sm:$0xf]
    %v569 = vld [vmem:[#allocation5 + $0x174] sm:$0xf]
    %v570 = vld [vmem:[#allocation5 + $0x178] sm:$0xf]
    %v571 = vld [vmem:[#allocation5 + $0x17c] sm:$0xf]
    %v572 = vld [vmem:[#allocation5 + $0x180] sm:$0xf]
    %v573 = vld [vmem:[#allocation5 + $0x184] sm:$0xf]
    %v574 = vld [vmem:[#allocation5 + $0x188] sm:$0xf]
    %v575 = vld [vmem:[#allocation5 + $0x18c] sm:$0xf]
    %v576 = vld [vmem:[#allocation5 + $0x190] sm:$0xf]
    %v577 = vld [vmem:[#allocation5 + $0x194] sm:$0xf]
    %v578 = vld [vmem:[#allocation5 + $0x198] sm:$0xf]
    %v579 = vld [vmem:[#allocation5 + $0x19c] sm:$0xf]
    %v580 = vld [vmem:[#allocation5 + $0x1a0] sm:$0xf]
    %v581 = vld [vmem:[#allocation5 + $0x1a4] sm:$0xf]
    %v582 = vld [vmem:[#allocation5 + $0x1a8] sm:$0xf]
    %v583 = vld [vmem:[#allocation5 + $0x1ac] sm:$0xf]
    %v584 = vld [vmem:[#allocation5 + $0x1b0] sm:$0xf]
    %v585 = vld [vmem:[#allocation5 + $0x1b4] sm:$0xf]
    %v586 = vld [vmem:[#allocation5 + $0x1b8] sm:$0xf]
    %v587 = vld [vmem:[#allocation5 + $0x1bc] sm:$0xf]
    %v588 = vld [vmem:[#allocation5 + $0x1c0] sm:$0xf]
    %v589 = vld [vmem:[#allocation5 + $0x1c4] sm:$0xf]
    %v590 = vld [vmem:[#allocation5 + $0x1c8] sm:$0xf]
    %v591 = vld [vmem:[#allocation5 + $0x1cc] sm:$0xf]
    %v592 = vld [vmem:[#allocation5 + $0x1d0] sm:$0xf]
    %v593 = vld [vmem:[#allocation5 + $0x1d4] sm:$0xf]
    %v594 = vld [vmem:[#allocation5 + $0x1d8] sm:$0xf]
    %v595 = vld [vmem:[#allocation5 + $0x1dc] sm:$0xf]
    %v596 = vld [vmem:[#allocation5 + $0x1e0] sm:$0xf]
    %v597 = vld [vmem:[#allocation5 + $0x1e4] sm:$0xf]
    %v598 = vld [vmem:[#allocation5 + $0x1e8] sm:$0xf]
    %v599 = vld [vmem:[#allocation5 + $0x1ec] sm:$0xf]
    %v600 = vld [vmem:[#allocation5 + $0x1f0] sm:$0xf]
    %v601 = vld [vmem:[#allocation5 + $0x1f4] sm:$0xf]
    %v602 = vld [vmem:[#allocation5 + $0x1f8] sm:$0xf]
    %v603 = vld [vmem:[#allocation5 + $0x1fc] sm:$0xf]
    %v604 = vld [vmem:[%s4] sm:$0x1]
    %v606 = vlaneseq
    %v607 = vshrl.u32 %v606, 7
    %v608 = vsub.s32 0, %v607
    %v609 = vrot.slane %v604, %v608
    %v739 = vunpack.c.l.b16 %v476
    %v740 = vunpack.c.l.b16 %v477
    %v741 = vunpack.c.l.b16 %v478
    %v742 = vunpack.c.l.b16 %v479
    %v743 = vunpack.c.l.b16 %v480
    %v744 = vunpack.c.l.b16 %v481
    %v745 = vunpack.c.l.b16 %v482
    %v746 = vunpack.c.l.b16 %v483
    %v747 = vunpack.c.l.b16 %v484
    %v748 = vunpack.c.l.b16 %v485
    %v749 = vunpack.c.l.b16 %v486
    %v750 = vunpack.c.l.b16 %v487
    %v751 = vunpack.c.l.b16 %v488
    %v752 = vunpack.c.l.b16 %v489
    %v753 = vunpack.c.l.b16 %v490
    %v754 = vunpack.c.l.b16 %v491
    %v755 = vunpack.c.l.b16 %v492
    %v756 = vunpack.c.l.b16 %v493
    %v757 = vunpack.c.l.b16 %v494
    %v758 = vunpack.c.l.b16 %v495
    %v759 = vunpack.c.l.b16 %v496
    %v760 = vunpack.c.l.b16 %v497
    %v761 = vunpack.c.l.b16 %v498
    %v762 = vunpack.c.l.b16 %v499
    %v763 = vunpack.c.l.b16 %v500
    %v764 = vunpack.c.l.b16 %v501
    %v765 = vunpack.c.l.b16 %v502
    %v766 = vunpack.c.l.b16 %v503
    %v767 = vunpack.c.l.b16 %v504
    %v768 = vunpack.c.l.b16 %v505
    %v769 = vunpack.c.l.b16 %v506
    %v770 = vunpack.c.l.b16 %v507
    %v771 = vunpack.c.l.b16 %v508
    %v772 = vunpack.c.l.b16 %v509
    %v773 = vunpack.c.l.b16 %v510
    %v774 = vunpack.c.l.b16 %v511
    %v775 = vunpack.c.l.b16 %v512
    %v776 = vunpack.c.l.b16 %v513
    %v777 = vunpack.c.l.b16 %v514
    %v778 = vunpack.c.l.b16 %v515
    %v779 = vunpack.c.l.b16 %v516
    %v780 = vunpack.c.l.b16 %v517
    %v781 = vunpack.c.l.b16 %v518
    %v782 = vunpack.c.l.b16 %v519
    %v783 = vunpack.c.l.b16 %v520
    %v784 = vunpack.c.l.b16 %v521
    %v785 = vunpack.c.l.b16 %v522
    %v786 = vunpack.c.l.b16 %v523
    %v787 = vunpack.c.l.b16 %v524
    %v788 = vunpack.c.l.b16 %v525
    %v789 = vunpack.c.l.b16 %v526
    %v790 = vunpack.c.l.b16 %v527
    %v791 = vunpack.c.l.b16 %v528
    %v792 = vunpack.c.l.b16 %v529
    %v793 = vunpack.c.l.b16 %v530
    %v794 = vunpack.c.l.b16 %v531
    %v795 = vunpack.c.l.b16 %v532
    %v796 = vunpack.c.l.b16 %v533
    %v797 = vunpack.c.l.b16 %v534
    %v798 = vunpack.c.l.b16 %v535
    %v799 = vunpack.c.l.b16 %v536
    %v800 = vunpack.c.l.b16 %v537
    %v801 = vunpack.c.l.b16 %v538
    %v802 = vunpack.c.l.b16 %v539
    %v803 = vunpack.c.l.b16 %v540
    %v804 = vunpack.c.l.b16 %v541
    %v805 = vunpack.c.l.b16 %v542
    %v806 = vunpack.c.l.b16 %v543
    %v807 = vunpack.c.l.b16 %v544
    %v808 = vunpack.c.l.b16 %v545
    %v809 = vunpack.c.l.b16 %v546
    %v810 = vunpack.c.l.b16 %v547
    %v811 = vunpack.c.l.b16 %v548
    %v812 = vunpack.c.l.b16 %v549
    %v813 = vunpack.c.l.b16 %v550
    %v814 = vunpack.c.l.b16 %v551
    %v815 = vunpack.c.l.b16 %v552
    %v816 = vunpack.c.l.b16 %v553
    %v817 = vunpack.c.l.b16 %v554
    %v818 = vunpack.c.l.b16 %v555
    %v819 = vunpack.c.l.b16 %v556
    %v820 = vunpack.c.l.b16 %v557
    %v821 = vunpack.c.l.b16 %v558
    %v822 = vunpack.c.l.b16 %v559
    %v823 = vunpack.c.l.b16 %v560
    %v824 = vunpack.c.l.b16 %v561
    %v825 = vunpack.c.l.b16 %v562
    %v826 = vunpack.c.l.b16 %v563
    %v827 = vunpack.c.l.b16 %v564
    %v828 = vunpack.c.l.b16 %v565
    %v829 = vunpack.c.l.b16 %v566
    %v830 = vunpack.c.l.b16 %v567
    %v831 = vunpack.c.l.b16 %v568
    %v832 = vunpack.c.l.b16 %v569
    %v833 = vunpack.c.l.b16 %v570
    %v834 = vunpack.c.l.b16 %v571
    %v835 = vunpack.c.l.b16 %v572
    %v836 = vunpack.c.l.b16 %v573
    %v837 = vunpack.c.l.b16 %v574
    %v838 = vunpack.c.l.b16 %v575
    %v839 = vunpack.c.l.b16 %v576
    %v840 = vunpack.c.l.b16 %v577
    %v841 = vunpack.c.l.b16 %v578
    %v842 = vunpack.c.l.b16 %v579
    %v843 = vunpack.c.l.b16 %v580
    %v844 = vunpack.c.l.b16 %v581
    %v845 = vunpack.c.l.b16 %v582
    %v846 = vunpack.c.l.b16 %v583
    %v847 = vunpack.c.l.b16 %v584
    %v848 = vunpack.c.l.b16 %v585
    %v849 = vunpack.c.l.b16 %v586
    %v850 = vunpack.c.l.b16 %v587
    %v851 = vunpack.c.l.b16 %v588
    %v852 = vunpack.c.l.b16 %v589
    %v853 = vunpack.c.l.b16 %v590
    %v854 = vunpack.c.l.b16 %v591
    %v855 = vunpack.c.l.b16 %v592
    %v856 = vunpack.c.l.b16 %v593
    %v857 = vunpack.c.l.b16 %v594
    %v858 = vunpack.c.l.b16 %v595
    %v859 = vunpack.c.l.b16 %v596
    %v860 = vunpack.c.l.b16 %v597
    %v861 = vunpack.c.l.b16 %v598
    %v862 = vunpack.c.l.b16 %v599
    %v863 = vunpack.c.l.b16 %v600
    %v864 = vunpack.c.l.b16 %v601
    %v865 = vunpack.c.l.b16 %v602
    %v866 = vunpack.c.l.b16 %v603
    %v867 = vpack.c.b16 %v740, %v739
    %v868 = vpack.c.b16 %v742, %v741
    %v869 = vpack.c.b16 %v744, %v743
    %v870 = vpack.c.b16 %v746, %v745
    %v871 = vpack.c.b16 %v748, %v747
    %v872 = vpack.c.b16 %v750, %v749
    %v873 = vpack.c.b16 %v752, %v751
    %v874 = vpack.c.b16 %v754, %v753
    %v875 = vpack.c.b16 %v756, %v755
    %v876 = vpack.c.b16 %v758, %v757
    %v877 = vpack.c.b16 %v760, %v759
    %v878 = vpack.c.b16 %v762, %v761
    %v879 = vpack.c.b16 %v764, %v763
    %v880 = vpack.c.b16 %v766, %v765
    %v881 = vpack.c.b16 %v768, %v767
    %v882 = vpack.c.b16 %v770, %v769
    %v883 = vpack.c.b16 %v772, %v771
    %v884 = vpack.c.b16 %v774, %v773
    %v885 = vpack.c.b16 %v776, %v775
    %v886 = vpack.c.b16 %v778, %v777
    %v887 = vpack.c.b16 %v780, %v779
    %v888 = vpack.c.b16 %v782, %v781
    %v889 = vpack.c.b16 %v784, %v783
    %v890 = vpack.c.b16 %v786, %v785
    %v891 = vpack.c.b16 %v788, %v787
    %v892 = vpack.c.b16 %v790, %v789
    %v893 = vpack.c.b16 %v792, %v791
    %v894 = vpack.c.b16 %v794, %v793
    %v895 = vpack.c.b16 %v796, %v795
    %v896 = vpack.c.b16 %v798, %v797
    %v897 = vpack.c.b16 %v800, %v799
    %v898 = vpack.c.b16 %v802, %v801
    %v899 = vpack.c.b16 %v804, %v803
    %v900 = vpack.c.b16 %v806, %v805
    %v901 = vpack.c.b16 %v808, %v807
    %v902 = vpack.c.b16 %v810, %v809
    %v903 = vpack.c.b16 %v812, %v811
    %v904 = vpack.c.b16 %v814, %v813
    %v905 = vpack.c.b16 %v816, %v815
    %v906 = vpack.c.b16 %v818, %v817
    %v907 = vpack.c.b16 %v820, %v819
    %v908 = vpack.c.b16 %v822, %v821
    %v909 = vpack.c.b16 %v824, %v823
    %v910 = vpack.c.b16 %v826, %v825
    %v911 = vpack.c.b16 %v828, %v827
    %v912 = vpack.c.b16 %v830, %v829
    %v913 = vpack.c.b16 %v832, %v831
    %v914 = vpack.c.b16 %v834, %v833
    %v915 = vpack.c.b16 %v836, %v835
    %v916 = vpack.c.b16 %v838, %v837
    %v917 = vpack.c.b16 %v840, %v839
    %v918 = vpack.c.b16 %v842, %v841
    %v919 = vpack.c.b16 %v844, %v843
    %v920 = vpack.c.b16 %v846, %v845
    %v921 = vpack.c.b16 %v848, %v847
    %v922 = vpack.c.b16 %v850, %v849
    %v923 = vpack.c.b16 %v852, %v851
    %v924 = vpack.c.b16 %v854, %v853
    %v925 = vpack.c.b16 %v856, %v855
    %v926 = vpack.c.b16 %v858, %v857
    %v927 = vpack.c.b16 %v860, %v859
    %v928 = vpack.c.b16 %v862, %v861
    %v929 = vpack.c.b16 %v864, %v863
    %v930 = vpack.c.b16 %v866, %v865
    %995 = vmatprep.subr.bf16.mxu0 0
    %996 = vmatpush1.bf16.msra.mxu0 %v867
    %997 = vmatprep.subr.bf16.mxu0 0
    %998 = vmatpush1.bf16.msra.mxu0 %v868
    %999 = vmatprep.subr.bf16.mxu0 0
    %1000 = vmatpush1.bf16.msra.mxu0 %v869
    %1001 = vmatprep.subr.bf16.mxu0 0
    %1002 = vmatpush1.bf16.msra.mxu0 %v870
    %1003 = vmatprep.subr.bf16.mxu0 0
    %1004 = vmatpush1.bf16.msra.mxu0 %v871
    %1005 = vmatprep.subr.bf16.mxu0 0
    %1006 = vmatpush1.bf16.msra.mxu0 %v872
    %1007 = vmatprep.subr.bf16.mxu0 0
    %1008 = vmatpush1.bf16.msra.mxu0 %v873
    %1009 = vmatprep.subr.bf16.mxu0 0
    %1010 = vmatpush1.bf16.msra.mxu0 %v874
    %1011 = vmatprep.subr.bf16.mxu0 0
    %1012 = vmatpush1.bf16.msra.mxu0 %v875
    %1013 = vmatprep.subr.bf16.mxu0 0
    %1014 = vmatpush1.bf16.msra.mxu0 %v876
    %1015 = vmatprep.subr.bf16.mxu0 0
    %1016 = vmatpush1.bf16.msra.mxu0 %v877
    %1017 = vmatprep.subr.bf16.mxu0 0
    %1018 = vmatpush1.bf16.msra.mxu0 %v878
    %1019 = vmatprep.subr.bf16.mxu0 0
    %1020 = vmatpush1.bf16.msra.mxu0 %v879
    %1021 = vmatprep.subr.bf16.mxu0 0
    %1022 = vmatpush1.bf16.msra.mxu0 %v880
    %1023 = vmatprep.subr.bf16.mxu0 0
    %1024 = vmatpush1.bf16.msra.mxu0 %v881
    %1025 = vmatprep.subr.bf16.mxu0 0
    %1026 = vmatpush1.bf16.msra.mxu0 %v882
    %1027 = vmatprep.mubr.bf16.mxu0 %v469
    %1028 = vmatmul.mubr.bf16.gmra.mrb[0].mxu0 %v468
    %v1029 = vpop.f32.mrb[0].mxu0
    %v1030 = vadd.f32 %v609, %v1029
    %v1031 = vpop.f32.mrb[0].mxu0
    %v1032 = vpop.f32.mrb[0].mxu0
    %v1033 = vpop.f32.mrb[0].mxu0
    %1034 = vdwg.mxu0
    %1035 = vmatprep.subr.bf16.mxu0 0
    %1036 = vmatpush1.bf16.msra.mxu0 %v883
    %1037 = vmatprep.subr.bf16.mxu0 0
    %1038 = vmatpush1.bf16.msra.mxu0 %v884
    %1039 = vmatprep.subr.bf16.mxu0 0
    %1040 = vmatpush1.bf16.msra.mxu0 %v885
    %1041 = vmatprep.subr.bf16.mxu0 0
    %1042 = vmatpush1.bf16.msra.mxu0 %v886
    %1043 = vmatprep.subr.bf16.mxu0 0
    %1044 = vmatpush1.bf16.msra.mxu0 %v887
    %1045 = vmatprep.subr.bf16.mxu0 0
    %1046 = vmatpush1.bf16.msra.mxu0 %v888
    %1047 = vmatprep.subr.bf16.mxu0 0
    %1048 = vmatpush1.bf16.msra.mxu0 %v889
    %1049 = vmatprep.subr.bf16.mxu0 0
    %1050 = vmatpush1.bf16.msra.mxu0 %v890
    %1051 = vmatprep.subr.bf16.mxu0 0
    %1052 = vmatpush1.bf16.msra.mxu0 %v891
    %1053 = vmatprep.subr.bf16.mxu0 0
    %1054 = vmatpush1.bf16.msra.mxu0 %v892
    %1055 = vmatprep.subr.bf16.mxu0 0
    %1056 = vmatpush1.bf16.msra.mxu0 %v893
    %1057 = vmatprep.subr.bf16.mxu0 0
    %1058 = vmatpush1.bf16.msra.mxu0 %v894
    %1059 = vmatprep.subr.bf16.mxu0 0
    %1060 = vmatpush1.bf16.msra.mxu0 %v895
    %1061 = vmatprep.subr.bf16.mxu0 0
    %1062 = vmatpush1.bf16.msra.mxu0 %v896
    %1063 = vmatprep.subr.bf16.mxu0 0
    %1064 = vmatpush1.bf16.msra.mxu0 %v897
    %1065 = vmatprep.subr.bf16.mxu0 0
    %1066 = vmatpush1.bf16.msra.mxu0 %v898
    %1067 = vmatprep.mubr.bf16.mxu0 %v471
    %1068 = vmatmul.mubr.bf16.gmra.mrb[0].mxu0 %v470
    %v1069 = vpop.f32.mrb[0].mxu0
    %v1070 = vadd.f32 %v1030, %v1069
    %v1071 = vpop.f32.mrb[0].mxu0
    %v1072 = vpop.f32.mrb[0].mxu0
    %v1073 = vpop.f32.mrb[0].mxu0
    %1074 = vdwg.mxu0
    %1075 = vmatprep.subr.bf16.mxu0 0
    %1076 = vmatpush1.bf16.msra.mxu0 %v899
    %1077 = vmatprep.subr.bf16.mxu0 0
    %1078 = vmatpush1.bf16.msra.mxu0 %v900
    %1079 = vmatprep.subr.bf16.mxu0 0
    %1080 = vmatpush1.bf16.msra.mxu0 %v901
    %1081 = vmatprep.subr.bf16.mxu0 0
    %1082 = vmatpush1.bf16.msra.mxu0 %v902
    %1083 = vmatprep.subr.bf16.mxu0 0
    %1084 = vmatpush1.bf16.msra.mxu0 %v903
    %1085 = vmatprep.subr.bf16.mxu0 0
    %1086 = vmatpush1.bf16.msra.mxu0 %v904
    %1087 = vmatprep.subr.bf16.mxu0 0
    %1088 = vmatpush1.bf16.msra.mxu0 %v905
    %1089 = vmatprep.subr.bf16.mxu0 0
    %1090 = vmatpush1.bf16.msra.mxu0 %v906
    %1091 = vmatprep.subr.bf16.mxu0 0
    %1092 = vmatpush1.bf16.msra.mxu0 %v907
    %1093 = vmatprep.subr.bf16.mxu0 0
    %1094 = vmatpush1.bf16.msra.mxu0 %v908
    %1095 = vmatprep.subr.bf16.mxu0 0
    %1096 = vmatpush1.bf16.msra.mxu0 %v909
    %1097 = vmatprep.subr.bf16.mxu0 0
    %1098 = vmatpush1.bf16.msra.mxu0 %v910
    %1099 = vmatprep.subr.bf16.mxu0 0
    %1100 = vmatpush1.bf16.msra.mxu0 %v911
    %1101 = vmatprep.subr.bf16.mxu0 0
    %1102 = vmatpush1.bf16.msra.mxu0 %v912
    %1103 = vmatprep.subr.bf16.mxu0 0
    %1104 = vmatpush1.bf16.msra.mxu0 %v913
    %1105 = vmatprep.subr.bf16.mxu0 0
    %1106 = vmatpush1.bf16.msra.mxu0 %v914
    %1107 = vmatprep.mubr.bf16.mxu0 %v473
    %1108 = vmatmul.mubr.bf16.gmra.mrb[0].mxu0 %v472
    %v1109 = vpop.f32.mrb[0].mxu0
    %v1110 = vadd.f32 %v1070, %v1109
    %v1111 = vpop.f32.mrb[0].mxu0
    %v1112 = vpop.f32.mrb[0].mxu0
    %v1113 = vpop.f32.mrb[0].mxu0
    %1114 = vdwg.mxu0
    %1115 = vmatprep.subr.bf16.mxu0 0
    %1116 = vmatpush1.bf16.msra.mxu0 %v915
    %1117 = vmatprep.subr.bf16.mxu0 0
    %1118 = vmatpush1.bf16.msra.mxu0 %v916
    %1119 = vmatprep.subr.bf16.mxu0 0
    %1120 = vmatpush1.bf16.msra.mxu0 %v917
    %1121 = vmatprep.subr.bf16.mxu0 0
    %1122 = vmatpush1.bf16.msra.mxu0 %v918
    %1123 = vmatprep.subr.bf16.mxu0 0
    %1124 = vmatpush1.bf16.msra.mxu0 %v919
    %1125 = vmatprep.subr.bf16.mxu0 0
    %1126 = vmatpush1.bf16.msra.mxu0 %v920
    %1127 = vmatprep.subr.bf16.mxu0 0
    %1128 = vmatpush1.bf16.msra.mxu0 %v921
    %1129 = vmatprep.subr.bf16.mxu0 0
    %1130 = vmatpush1.bf16.msra.mxu0 %v922
    %1131 = vmatprep.subr.bf16.mxu0 0
    %1132 = vmatpush1.bf16.msra.mxu0 %v923
    %1133 = vmatprep.subr.bf16.mxu0 0
    %1134 = vmatpush1.bf16.msra.mxu0 %v924
    %1135 = vmatprep.subr.bf16.mxu0 0
    %1136 = vmatpush1.bf16.msra.mxu0 %v925
    %1137 = vmatprep.subr.bf16.mxu0 0
    %1138 = vmatpush1.bf16.msra.mxu0 %v926
    %1139 = vmatprep.subr.bf16.mxu0 0
    %1140 = vmatpush1.bf16.msra.mxu0 %v927
    %1141 = vmatprep.subr.bf16.mxu0 0
    %1142 = vmatpush1.bf16.msra.mxu0 %v928
    %1143 = vmatprep.subr.bf16.mxu0 0
    %1144 = vmatpush1.bf16.msra.mxu0 %v929
    %1145 = vmatprep.subr.bf16.mxu0 0
    %1146 = vmatpush1.bf16.msra.mxu0 %v930
    %1147 = vmatprep.mubr.bf16.mxu0 %v475
    %1148 = vmatmul.mubr.bf16.gmra.mrb[0].mxu0 %v474
    %v1149 = vpop.f32.mrb[0].mxu0
    %v1150 = vadd.f32 %v1110, %v1149
    %v1151 = vpop.f32.mrb[0].mxu0
    %v1152 = vpop.f32.mrb[0].mxu0
    %v1153 = vpop.f32.mrb[0].mxu0
    %1154 = vdwg.mxu0
    %v1155 = vmax.f32 %v1150, 0.0
    %v1156 = vld [vmem:[%s5] sm:$0xff]
    %v1157 = vld [vmem:[%s5 + $0x8] sm:$0xff]
    %v1158 = vld [vmem:[%s5 + $0x10] sm:$0xff]
    %v1159 = vld [vmem:[%s5 + $0x18] sm:$0xff]
    %v1160 = vld [vmem:[%s5 + $0x20] sm:$0xff]
    %v1161 = vld [vmem:[%s5 + $0x28] sm:$0xff]
    %v1162 = vld [vmem:[%s5 + $0x30] sm:$0xff]
    %v1163 = vld [vmem:[%s5 + $0x38] sm:$0xff]
    %v1164 = vld [vmem:[%s5 + $0x40] sm:$0xff]
    %v1165 = vld [vmem:[%s5 + $0x48] sm:$0xff]
    %v1166 = vld [vmem:[%s5 + $0x50] sm:$0xff]
    %v1167 = vld [vmem:[%s5 + $0x58] sm:$0xff]
    %v1168 = vld [vmem:[%s5 + $0x60] sm:$0xff]
    %v1169 = vld [vmem:[%s5 + $0x68] sm:$0xff]
    %v1170 = vld [vmem:[%s5 + $0x70] sm:$0xff]
    %v1171 = vld [vmem:[%s5 + $0x78] sm:$0xff]
    %v1172 = vld [vmem:[%s6] sm:$0x1]
    %v1174 = vlaneseq
    %v1175 = vshrl.u32 %v1174, 7
    %v1176 = vsub.s32 0, %v1175
    %v1177 = vrot.slane %v1172, %v1176
    %1179 = vmatprep.subr.mxu0 0.0
    %1180 = vmatpush1.msra.mxu0 %v1156
    %1181 = vmatprep.subr.mxu0 0.0
    %1182 = vmatpush1.msra.mxu0 %v1157
    %1183 = vmatprep.subr.mxu0 0.0
    %1184 = vmatpush1.msra.mxu0 %v1158
    %1185 = vmatprep.subr.mxu0 0.0
    %1186 = vmatpush1.msra.mxu0 %v1159
    %1187 = vmatprep.subr.mxu0 0.0
    %1188 = vmatpush1.msra.mxu0 %v1160
    %1189 = vmatprep.subr.mxu0 0.0
    %1190 = vmatpush1.msra.mxu0 %v1161
    %1191 = vmatprep.subr.mxu0 0.0
    %1192 = vmatpush1.msra.mxu0 %v1162
    %1193 = vmatprep.subr.mxu0 0.0
    %1194 = vmatpush1.msra.mxu0 %v1163
    %1195 = vmatprep.subr.mxu0 0.0
    %1196 = vmatpush1.msra.mxu0 %v1164
    %1197 = vmatprep.subr.mxu0 0.0
    %1198 = vmatpush1.msra.mxu0 %v1165
    %1199 = vmatprep.subr.mxu0 0.0
    %1200 = vmatpush1.msra.mxu0 %v1166
    %1201 = vmatprep.subr.mxu0 0.0
    %1202 = vmatpush1.msra.mxu0 %v1167
    %1203 = vmatprep.subr.mxu0 0.0
    %1204 = vmatpush1.msra.mxu0 %v1168
    %1205 = vmatprep.subr.mxu0 0.0
    %1206 = vmatpush1.msra.mxu0 %v1169
    %1207 = vmatprep.subr.mxu0 0.0
    %1208 = vmatpush1.msra.mxu0 %v1170
    %1209 = vmatprep.subr.mxu0 0.0
    %1210 = vmatpush1.msra.mxu0 %v1171
    %1211 = vmatprep.subr.mxu0 0.0
    %1212 = vmatpush1.msra.mxu0 0.0
    %1213 = vmatprep.subr.mxu0 0.0
    %1214 = vmatpush1.msra.mxu0 0.0
    %1215 = vmatprep.subr.mxu0 0.0
    %1216 = vmatpush1.msra.mxu0 0.0
    %1217 = vmatprep.subr.mxu0 0.0
    %1218 = vmatpush1.msra.mxu0 0.0
    %1219 = vmatprep.subr.mxu0 0.0
    %1220 = vmatpush1.msra.mxu0 0.0
    %1221 = vmatprep.subr.mxu0 0.0
    %1222 = vmatpush1.msra.mxu0 0.0
    %1223 = vmatprep.subr.mxu0 0.0
    %1224 = vmatpush1.msra.mxu0 0.0
    %1225 = vmatprep.subr.mxu0 0.0
    %1226 = vmatpush1.msra.mxu0 0.0
    %1227 = vmatprep.subr.mxu0 0.0
    %1228 = vmatpush1.msra.mxu0 0.0
    %1229 = vmatprep.subr.mxu0 0.0
    %1230 = vmatpush1.msra.mxu0 0.0
    %1231 = vmatprep.subr.mxu0 0.0
    %1232 = vmatpush1.msra.mxu0 0.0
    %1233 = vmatprep.subr.mxu0 0.0
    %1234 = vmatpush1.msra.mxu0 0.0
    %1235 = vmatprep.subr.mxu0 0.0
    %1236 = vmatpush1.msra.mxu0 0.0
    %1237 = vmatprep.subr.mxu0 0.0
    %1238 = vmatpush1.msra.mxu0 0.0
    %1239 = vmatprep.subr.mxu0 0.0
    %1240 = vmatpush1.msra.mxu0 0.0
    %1241 = vmatprep.subr.mxu0 0.0
    %1242 = vmatpush1.msra.mxu0 0.0
    %1243 = vmatprep.mubr.f32.mxu0 0.0
    %1244 = vmatmul.mubr.f32.gmra.mrb[0].mxu0 %v1155
    %v1245 = vpop.f32.mrb[0].mxu0
    %v1246 = vadd.f32 %v1177, %v1245
    %v1247 = vpop.f32.mrb[0].mxu0
    %1248 = vdwg.mxu0
    %vm1249 = vcmask 80896
    %1250 = vst.msk [vmem:[#allocation7] sm:$0xff] %vm1249, %v1246
    // Predicated region
    $region38: #{mlp_forward.1} parent=1 // pred_check
      _
    $region39: #{mlp_forward.1} parent=1 // pred_check_branch
      %1252 = sbr.rel (0) target = $region41
    $region40: #{mlp_forward.1} parent=1 // pred_region
      %s1254 = ssub.s32 128, 128
      %1255 = vsyncadd [#allocation4], %s1254
      %s1257 = sshll.u32 [#allocation7], 4
      %s1258 = int_to_ptr.vmem [resolvable:$true] %s1257
      %1260 = dma.vmem_to_hbm [thread:$0]  %s1258, 128, %s7, [#allocation4]
    $region41: #{mlp_forward.1} parent=1 // pred_fallthru
      _
    // Predicated region
    $region42: #{mlp_forward.1} parent=1 // pred_check
      _
    $region43: #{mlp_forward.1} parent=1 // pred_check_branch
      %1262 = sbr.rel (0) target = $region45
    $region44: #{mlp_forward.1} parent=1 // pred_region
      %1263 = dma.done [#allocation4], 128
    $region45: #{mlp_forward.1} parent=1 // pred_fallthru
      _
    %1264 = vsyncpa [#allocation3], 1
    %1265 = vsyncpa [#allocation6], 1
    %1266 = vsyncpa [#allocation4], 1

</llo_original>
